<compile_context>
chip_gen: v7x
topology: tpu7x:2x2x1
jax: 0.10.0
libtpu: 0.0.40
codegen_flags: <defaults>
</compile_context>

<pallas_src>
import functools

import jax
import jax.numpy as jnp
from jax import lax
from jax.experimental import pallas as pl
from jax.experimental.pallas import tpu as pltpu

_MIB = 1024 * 1024


def _round_up(a, b):
    return ((a + b - 1) // b) * b


def _vmem_capacity_bytes():
    try:
        return int(pltpu.get_tpu_info().vmem_capacity_bytes)
    except Exception:
        return 64 * _MIB  # conservative assumption (v7x per-core VMEM)


# ---------------------------------------------------------------------------
# Main path: each block holds whole rows (full lane extent), single pass.
# ---------------------------------------------------------------------------
def _rln_row_kernel(x_ref, gamma_ref, beta_ref, o_ref, *, eps, hw):
    # x_ref/o_ref: (TR, HW); gamma_ref/beta_ref: (TR, 1).
    # NOTE: boundary (partial) row blocks contain Pallas-padded/undefined rows;
    # their stats can be garbage (even NaN/Inf) but those rows are never
    # written back and nothing here reduces across rows, so it is benign.
    x = x_ref[...]
    inv_hw = 1.0 / float(hw)
    inv_hw_m1 = 1.0 / (float(hw) - 1.0)
    # Single-pass moments in f32.  Mild cancellation risk if |mean| >> std
    # (two-pass is safer numerically); clamp var at 0 to be safe.
    s1 = jnp.sum(x.astype(jnp.float32), axis=1, keepdims=True)            # (TR,1)
    s2 = jnp.sum(jnp.square(x.astype(jnp.float32)), axis=1, keepdims=True)
    mean = s1 * inv_hw
    var = jnp.maximum((s2 - float(hw) * mean * mean) * inv_hw_m1, 0.0)
    inv = lax.rsqrt(var + eps) * gamma_ref[...].astype(jnp.float32)       # (TR,1)
    shift = beta_ref[...].astype(jnp.float32) - mean * inv
    o_ref[...] = (x.astype(jnp.float32) * inv + shift).astype(o_ref.dtype)


# ---------------------------------------------------------------------------
# Huge-H*W fallback: lane-tiled stats pass + elementwise apply pass.
# ---------------------------------------------------------------------------
def _rln_stats_kernel(x_ref, gamma_ref, beta_ref, scale_ref, shift_ref,
                      s1_ref, s2_ref, *, eps, hw, tl):
    j = pl.program_id(1)

    @pl.when(j == 0)
    def _():
        s1_ref[...] = jnp.zeros_like(s1_ref)
        s2_ref[...] = jnp.zeros_like(s2_ref)

    xf = x_ref[...].astype(jnp.float32)
    if hw % tl != 0:
        # Mask the tail of the final (partial) lane block out of the sums.
        lane = j * tl + lax.broadcasted_iota(jnp.int32, xf.shape, 1)
        xf = jnp.where(lane < hw, xf, 0.0)
    s1_ref[...] += jnp.sum(xf, axis=1, keepdims=True)
    s2_ref[...] += jnp.sum(xf * xf, axis=1, keepdims=True)

    @pl.when(j == pl.num_programs(1) - 1)
    def _():
        mean = s1_ref[...] * (1.0 / float(hw))
        var = jnp.maximum(
            (s2_ref[...] - float(hw) * mean * mean) * (1.0 / (float(hw) - 1.0)),
            0.0)
        inv = lax.rsqrt(var + eps) * gamma_ref[...].astype(jnp.float32)
        scale_ref[...] = inv
        shift_ref[...] = beta_ref[...].astype(jnp.float32) - mean * inv


def _rln_apply_kernel(x_ref, scale_ref, shift_ref, o_ref):
    o_ref[...] = (x_ref[...].astype(jnp.float32) * scale_ref[...]
                  + shift_ref[...]).astype(o_ref.dtype)


# ---------------------------------------------------------------------------
# Wrapper
# ---------------------------------------------------------------------------
def randomized_layer_norm(x, gamma, beta, *, eps=1e-3):
    """Eval-mode forward of RandomizedLayerNorm.

    Args:
      x:     (N, C, H, W) array (NCHW, as in PyTorch).
      gamma: (C,) scale parameter.
      beta:  (C,) offset parameter.
    Returns:
      (N, C, H, W) array, same dtype as x.
    """
    N, C, H, W = x.shape
    NC, HW = N * C, H * W
    if HW < 2:
        raise ValueError("unbiased variance requires H*W >= 2")

    itemsize = jnp.dtype(x.dtype).itemsize
    sub = max(8, 32 // itemsize)  # sublane multiple: 8 f32, 16 bf16, 32 int8/fp8

    x2 = x.reshape(NC, HW)
    # Per-row params (row = n*C + c -> channel c), shape (NC, 1).  Pallas
    # handles partial boundary row blocks, so no padding is needed.
    g = jnp.tile(gamma.astype(jnp.float32), N).reshape(NC, 1)
    b = jnp.tile(beta.astype(jnp.float32), N).reshape(NC, 1)

    vmem_cap = _vmem_capacity_bytes()
    big_vmem = vmem_cap >= 128 * _MIB          # v5e/v6e: 128 MiB; v7x: 64 MiB/TC
    target_block_bytes = (8 if big_vmem else 4) * _MIB
    pipeline_budget = (40 if big_vmem else 28) * _MIB

    bytes_per_row = HW * itemsize
    # Per row of block height: double-buffered in + out x-slab plus two
    # lane-padded (tr,1) f32 param buffers (each pads to 128 lanes), x2 bufs.
    per_row_pipeline = 4 * bytes_per_row + 4 * 128 * 4
    tr_fit = (pipeline_budget // per_row_pipeline) // sub * sub

    if tr_fit >= sub:
        # ---------------- Main path: whole rows per block ----------------
        tr = max(sub, (target_block_bytes // bytes_per_row) // sub * sub)
        tr = min(tr, tr_fit, _round_up(NC, sub))
        num_blocks = pl.cdiv(NC, tr)
        # Keep >= 4 grid steps so both v7x TensorCores get blocks, but only if
        # the shrunken block stays >= 2 MiB (on single-TC v5e/v6e smaller
        # blocks are pure per-step overhead).
        if num_blocks < 4:
            tr_small = max(sub, _round_up(pl.cdiv(NC, 4), sub))
            if tr_small < tr and tr_small * bytes_per_row >= 2 * _MIB:
                tr = tr_small
                num_blocks = pl.cdiv(NC, tr)

        need = tr * per_row_pipeline
        vmem_limit = max(16 * _MIB, min(48 * _MIB, need + 4 * _MIB))

        kernel = functools.partial(_rln_row_kernel, eps=float(eps), hw=HW)
        out2 = pl.pallas_call(
            kernel,
            out_shape=jax.ShapeDtypeStruct((NC, HW), x.dtype),
            grid=(num_blocks,),
            in_specs=[
                pl.BlockSpec((tr, HW), lambda i: (i, 0)),
                pl.BlockSpec((tr, 1), lambda i: (i, 0)),
                pl.BlockSpec((tr, 1), lambda i: (i, 0)),
            ],
            out_specs=pl.BlockSpec((tr, HW), lambda i: (i, 0)),
            compiler_params=pltpu.CompilerParams(
                dimension_semantics=("parallel",),
                vmem_limit_bytes=vmem_limit),
            cost_estimate=pl.CostEstimate(
                flops=7 * NC * HW,
                transcendentals=NC,
                bytes_accessed=2 * NC * HW * itemsize + 2 * NC * 4),
        )(x2, g, b)
        return out2.reshape(N, C, H, W)

    # -------- Huge-H*W fallback: a single whole row does not fit the --------
    # -------- budget -> lane-tiled stats pass + elementwise apply pass ------
    tr = min(_round_up(NC, sub), 8 * sub)
    tl = (target_block_bytes // (tr * itemsize)) // 128 * 128
    tl = max(128, min(tl, _round_up(HW, 128)))
    num_row_blocks = pl.cdiv(NC, tr)
    num_lane_blocks = pl.cdiv(HW, tl)

    stats_need = 2 * tr * tl * itemsize + 6 * tr * 128 * 4
    stats_limit = max(16 * _MIB, min(48 * _MIB, stats_need + 4 * _MIB))
    scale, shift = pl.pallas_call(
        functools.partial(_rln_stats_kernel, eps=float(eps), hw=HW, tl=tl),
        out_shape=(jax.ShapeDtypeStruct((NC, 1), jnp.float32),
                   jax.ShapeDtypeStruct((NC, 1), jnp.float32)),
        grid=(num_row_blocks, num_lane_blocks),
        in_specs=[
            pl.BlockSpec((tr, tl), lambda i, j: (i, j)),
            pl.BlockSpec((tr, 1), lambda i, j: (i, 0)),
            pl.BlockSpec((tr, 1), lambda i, j: (i, 0)),
        ],
        out_specs=[
            pl.BlockSpec((tr, 1), lambda i, j: (i, 0)),
            pl.BlockSpec((tr, 1), lambda i, j: (i, 0)),
        ],
        scratch_shapes=[pltpu.VMEM((tr, 1), jnp.float32),
                        pltpu.VMEM((tr, 1), jnp.float32)],
        compiler_params=pltpu.CompilerParams(
            dimension_semantics=("parallel", "arbitrary"),
            vmem_limit_bytes=stats_limit),
        cost_estimate=pl.CostEstimate(
            flops=3 * NC * HW, transcendentals=NC,
            bytes_accessed=NC * HW * itemsize + 4 * NC * 4),
    )(x2, g, b)

    apply_need = 4 * tr * tl * itemsize + 4 * tr * 128 * 4
    apply_limit = max(16 * _MIB, min(48 * _MIB, apply_need + 4 * _MIB))
    out2 = pl.pallas_call(
        _rln_apply_kernel,
        out_shape=jax.ShapeDtypeStruct((NC, HW), x.dtype),
        grid=(num_row_blocks, num_lane_blocks),
        in_specs=[
            pl.BlockSpec((tr, tl), lambda i, j: (i, j)),
            pl.BlockSpec((tr, 1), lambda i, j: (i, 0)),
            pl.BlockSpec((tr, 1), lambda i, j: (i, 0)),
        ],
        out_specs=pl.BlockSpec((tr, tl), lambda i, j: (i, j)),
        compiler_params=pltpu.CompilerParams(
            dimension_semantics=("parallel", "parallel"),
            vmem_limit_bytes=apply_limit),
        cost_estimate=pl.CostEstimate(
            flops=2 * NC * HW, transcendentals=0,
            bytes_accessed=2 * NC * HW * itemsize + 8 * NC),
    )(x2, scale, shift)
    return out2.reshape(N, C, H, W)


def _reference(x, gamma, beta, eps=1e-3):
    xf = x.astype(jnp.float32)
    mean = jnp.mean(xf, axis=(2, 3), keepdims=True)
    var = jnp.sum((xf - mean) ** 2, axis=(2, 3), keepdims=True) / (
        x.shape[2] * x.shape[3] - 1)
    inv = lax.rsqrt(var + eps) * gamma.reshape(1, -1, 1, 1)
    return (xf * inv + (beta.reshape(1, -1, 1, 1) - mean * inv)).astype(x.dtype)


if __name__ == "__main__":
    key = jax.random.PRNGKey(0)
    N, C, H, W = 2, 4, 16, 16
    x = jax.random.normal(key, (N, C, H, W), dtype=jnp.float32)

    # Deterministic parameter init matching the module's __init__.
    gamma = jnp.ones((C,), dtype=jnp.float32)   # self.gamma = ones(num_features)
    beta = jnp.zeros((C,), dtype=jnp.float32)   # self.beta  = zeros(num_features)

    out = randomized_layer_norm(x, gamma, beta)
    out = jax.block_until_ready(out)

    ref = _reference(x, gamma, beta)
    assert out.shape == (N, C, H, W)
    assert jnp.allclose(out, ref, atol=1e-4, rtol=1e-4), "mismatch vs reference"

    print("KERNEL_OK")
</pallas_src>

<mosaic_0001>
module attributes {stable_mosaic.version = 11 : i64} {
  func.func @_rln_row_kernel(%arg0: i32, %arg1: memref<8x256xf32, #tpu.memory_space<vmem>>, %arg2: memref<8x1xf32, #tpu.memory_space<vmem>>, %arg3: memref<8x1xf32, #tpu.memory_space<vmem>>, %arg4: memref<8x256xf32, #tpu.memory_space<vmem>>) attributes {dimension_semantics = [#tpu.dimension_semantics<parallel>], iteration_bounds = array<i64: 1>, scalar_prefetch = 0 : i64, scratch_operands = 0 : i64, tpu.core_type = #tpu.core_type<tc>, window_params = [{transform_indices = @transform_0, window_bounds = array<i64: 8, 256>}, {transform_indices = @transform_1, window_bounds = array<i64: 8, 1>}, {transform_indices = @transform_2, window_bounds = array<i64: 8, 1>}, {transform_indices = @transform_3, window_bounds = array<i64: 8, 256>}]} {
    %c0 = arith.constant 0 : index
    %c0_0 = arith.constant 0 : index
    %0 = vector.load %arg1[%c0, %c0_0] : memref<8x256xf32, #tpu.memory_space<vmem>>, vector<8x256xf32>
    %cst = arith.constant dense<0.000000e+00> : vector<8xf32>
    %1 = vector.multi_reduction <add>, %0, %cst [1] : vector<8x256xf32> to vector<8xf32>
    %2 = vector.shape_cast %1 : vector<8xf32> to vector<8x1xf32>
    %3 = arith.mulf %0, %0 : vector<8x256xf32>
    %cst_1 = arith.constant dense<0.000000e+00> : vector<8xf32>
    %4 = vector.multi_reduction <add>, %3, %cst_1 [1] : vector<8x256xf32> to vector<8xf32>
    %5 = vector.shape_cast %4 : vector<8xf32> to vector<8x1xf32>
    %cst_2 = arith.constant 3.906250e-03 : f32
    %6 = vector.broadcast %cst_2 : f32 to vector<8x1xf32>
    %7 = arith.mulf %2, %6 : vector<8x1xf32>
    %cst_3 = arith.constant 2.560000e+02 : f32
    %8 = vector.broadcast %cst_3 : f32 to vector<8x1xf32>
    %9 = arith.mulf %8, %7 : vector<8x1xf32>
    %10 = arith.mulf %9, %7 : vector<8x1xf32>
    %11 = arith.subf %5, %10 : vector<8x1xf32>
    %cst_4 = arith.constant 0.00392156886 : f32
    %12 = vector.broadcast %cst_4 : f32 to vector<8x1xf32>
    %13 = arith.mulf %11, %12 : vector<8x1xf32>
    %cst_5 = arith.constant 0.000000e+00 : f32
    %14 = vector.broadcast %cst_5 : f32 to vector<8x1xf32>
    %15 = arith.maximumf %13, %14 : vector<8x1xf32>
    %cst_6 = arith.constant 1.000000e-03 : f32
    %16 = vector.broadcast %cst_6 : f32 to vector<8x1xf32>
    %17 = arith.addf %15, %16 : vector<8x1xf32>
    %18 = math.rsqrt %17 : vector<8x1xf32>
    %c0_7 = arith.constant 0 : index
    %c0_8 = arith.constant 0 : index
    %19 = vector.load %arg2[%c0_7, %c0_8] : memref<8x1xf32, #tpu.memory_space<vmem>>, vector<8x1xf32>
    %20 = arith.mulf %18, %19 : vector<8x1xf32>
    %c0_9 = arith.constant 0 : index
    %c0_10 = arith.constant 0 : index
    %21 = vector.load %arg3[%c0_9, %c0_10] : memref<8x1xf32, #tpu.memory_space<vmem>>, vector<8x1xf32>
    %22 = arith.mulf %7, %20 : vector<8x1xf32>
    %23 = arith.subf %21, %22 : vector<8x1xf32>
    %24 = vector.broadcast %20 : vector<8x1xf32> to vector<8x256xf32>
    %25 = arith.mulf %0, %24 : vector<8x256xf32>
    %26 = vector.broadcast %23 : vector<8x1xf32> to vector<8x256xf32>
    %27 = arith.addf %25, %26 : vector<8x256xf32>
    %c0_11 = arith.constant 0 : index
    %c0_12 = arith.constant 0 : index
    %28 = vector.load %arg4[%c0_11, %c0_12] : memref<8x256xf32, #tpu.memory_space<vmem>>, vector<8x256xf32>
    tpu.vector_store %arg4[%c0_11, %c0_12], %27 {strides = array<i32>} : memref<8x256xf32, #tpu.memory_space<vmem>>, vector<8x256xf32>,
    return
  }
  func.func @transform_0(%arg0: i32) -> (i32, i32) {
    %c0_i32 = arith.constant 0 : i32
    %c0_i32_0 = arith.constant 0 : i32
    return %arg0, %c0_i32 : i32, i32
  }
  func.func @transform_1(%arg0: i32) -> (i32, i32) {
    %c0_i32 = arith.constant 0 : i32
    %c0_i32_0 = arith.constant 0 : i32
    return %arg0, %c0_i32 : i32, i32
  }
  func.func @transform_2(%arg0: i32) -> (i32, i32) {
    %c0_i32 = arith.constant 0 : i32
    %c0_i32_0 = arith.constant 0 : i32
    return %arg0, %c0_i32 : i32, i32
  }
  func.func @transform_3(%arg0: i32) -> (i32, i32) {
    %c0_i32 = arith.constant 0 : i32
    %c0_i32_0 = arith.constant 0 : i32
    return %arg0, %c0_i32 : i32, i32
  }
}

</mosaic_0001>

<llo_original>
// kernel: tpu_custom_call.1
$region0: #{tpu_custom_call.1}
  #allocation0 [shape = 'u32[]', space=smem, size = 0x4, offset = 0x4, fixed_abs, tag = 'smem constant byte address 0x4 - core index']
  #allocation1 [shape = 'u32[144,128]{1,0:T(1,128)}', space=vmem, size = 0x12000, scoped, tag = 'internal scratch']
  %s0 = inlined_call_operand.vmem [shape: f32[8,256], index: 0, kind: input, shape index: {}]
  %s1 = inlined_call_operand.vmem [shape: f32[8,1], index: 1, kind: input, shape index: {}]
  %s2 = inlined_call_operand.vmem [shape: f32[8,1], index: 2, kind: input, shape index: {}]
  %s3 = inlined_call_operand.hbm [shape: f32[8,256], index: 3, kind: output, shape index: {}]
  %s4 = sld [smem:[#allocation0]]
  $region22: #{tpu_custom_call.1} parent=0
    _
  %s6 = ssub.s32 1, %s4
  %s7 = scalar_select 0, %s6, %s4
  $region1: #{tpu_custom_call.1} parent=0
    #allocation2 [shape = 'u8[8192]{0}', space=vmem, size = 0x2000, scoped, tag = 'output window, operand 0, single buffered']
    #allocation3 [shape = 's32[1]{0}', space=sflag, size = 0x4, scoped, tag = 'scoped memory for tpu_custom_call.1']
    %8 = vsyncpa [#allocation3], 0
    // Predicated region
    $region2: #{tpu_custom_call.1} parent=1 // pred_check
      _
    $region3: #{tpu_custom_call.1} parent=1 // pred_check_branch
      %10 = sbr.rel (0) target = $region5
    $region4: #{tpu_custom_call.1} parent=1 // pred_region
      _
    $region5: #{tpu_custom_call.1} parent=1 // pred_fallthru
      _
    // Predicated region
    $region6: #{tpu_custom_call.1} parent=1 // pred_check
      _
    $region7: #{tpu_custom_call.1} parent=1 // pred_check_branch
      %12 = sbr.rel (0) target = $region9
    $region8: #{tpu_custom_call.1} parent=1 // pred_region
      _
    $region9: #{tpu_custom_call.1} parent=1 // pred_fallthru
      _
    // Predicated region
    $region10: #{tpu_custom_call.1} parent=1 // pred_check
      _
    $region11: #{tpu_custom_call.1} parent=1 // pred_check_branch
      %14 = sbr.rel (0) target = $region13
    $region12: #{tpu_custom_call.1} parent=1 // pred_region
      _
    $region13: #{tpu_custom_call.1} parent=1 // pred_fallthru
      _
    %v15 = vld [vmem:[%s0] sm:$0xff]
    %v16 = vld [vmem:[%s0 + $0x8] sm:$0xff]
    %v17 = vadd.f32 %v15, %v16
    %18 = vadd.xlane.f32.xlu0 %v17
    %v19 = vpop.xlane.xlu0 %18
    %v20 = vmul.f32 %v15, %v15
    %v21 = vmul.f32 %v16, %v16
    %v22 = vadd.f32 %v20, %v21
    %23 = vadd.xlane.f32.xlu0 %v22
    %v24 = vpop.xlane.xlu0 %23
    %v25 = vmul.f32 %v19, 0.00390625
    %v26 = vmul.f32 %v25, 256.0
    %v27 = vmul.f32 %v26, %v25
    %v28 = vsub.f32 %v24, %v27
    %v29 = vmul.f32 %v28, 0.003921569
    %v30 = vmax.f32 %v29, 0.0
    %v31 = vadd.f32 %v30, 0.001
    %v32 = vrsqrt.pop %v31
    %v33 = vld [vmem:[%s1] sm:$0xff]
    %v34 = vmul.f32 %v32, %v33
    %v35 = vld [vmem:[%s2] sm:$0xff]
    %v36 = vmul.f32 %v25, %v34
    %v37 = vsub.f32 %v35, %v36
    %39 = vset.pattern.permute.xlu0 0
    %40 = vperm.xlu0 %39, %v34
    %v41 = vpop.permute.xlu0 %40
    %v43 = vmul.f32 %v15, %v41
    %v44 = vmul.f32 %v16, %v41
    %46 = vset.pattern.permute.xlu0 0
    %47 = vperm.xlu0 %46, %v37
    %v48 = vpop.permute.xlu0 %47
    %v50 = vadd.f32 %v43, %v48
    %v51 = vadd.f32 %v44, %v48
    %52 = vst [vmem:[#allocation2] sm:$0xff] %v50
    %53 = vst [vmem:[#allocation2 + $0x8] sm:$0xff] %v51
    // Predicated region
    $region14: #{tpu_custom_call.1} parent=1 // pred_check
      _
    $region15: #{tpu_custom_call.1} parent=1 // pred_check_branch
      %55 = sbr.rel (0) target = $region17
    $region16: #{tpu_custom_call.1} parent=1 // pred_region
      %s57 = ssub.s32 256, 256
      %58 = vsyncadd [#allocation3], %s57
      %s60 = sshll.u32 [#allocation2], 4
      %s61 = int_to_ptr.vmem [resolvable:$true] %s60
      %63 = dma.vmem_to_hbm [thread:$0]  %s61, 256, %s3, [#allocation3]
    $region17: #{tpu_custom_call.1} parent=1 // pred_fallthru
      _
    // Predicated region
    $region18: #{tpu_custom_call.1} parent=1 // pred_check
      _
    $region19: #{tpu_custom_call.1} parent=1 // pred_check_branch
      %65 = sbr.rel (0) target = $region21
    $region20: #{tpu_custom_call.1} parent=1 // pred_region
      %66 = dma.done [#allocation3], 256
    $region21: #{tpu_custom_call.1} parent=1 // pred_fallthru
      _
    %67 = vsyncpa [#allocation3], 1

</llo_original>
